<compile_context>
chip_gen: v7x
topology: tpu7x:2x2x1
jax: 0.10.0
libtpu: 0.0.40
codegen_flags: <defaults>
</compile_context>

<pallas_src>
import functools

import jax
import jax.numpy as jnp
from jax import lax
from jax.experimental import pallas as pl
from jax.experimental.pallas import tpu as pltpu


# ----------------------------------------------------------------------------
# Fused Pallas kernel: out = post( sum_i act(A_i) @ W_i + shift )
#   A_i, W_i are bf16 (BN scale pre-folded into W) -> MXU runs at bf16 rate.
#   Activation / shift / tanh stay in f32 (v5e VPU/EUP have no bf16).
# ----------------------------------------------------------------------------
def _fused_kernel(*refs, n_in, act, post):
    a_refs = refs[:n_in]
    w_refs = refs[n_in:2 * n_in]
    shift_ref = refs[2 * n_in]
    o_ref = refs[2 * n_in + 1]

    acc = None
    for a_ref, w_ref in zip(a_refs, w_refs):
        a = a_ref[...].astype(jnp.float32)
        if act == "relu":
            a = jnp.maximum(a, 0.0)
        elif act == "leaky":
            a = jnp.where(a > 0, a, 0.2 * a)          # LeakyReLU(0.2)
        d = jnp.dot(a.astype(jnp.bfloat16), w_ref[...],
                    preferred_element_type=jnp.float32)
        acc = d if acc is None else acc + d
    y = acc + shift_ref[...]                          # fused BatchNorm(eval) shift
    if post == "tanh":
        y = jnp.tanh(y)
    o_ref[...] = y.astype(o_ref.dtype)


def _round_up(x, m):
    return (x + m - 1) // m * m


def _pick_tm(M, K):
    """Row-tile: as large as possible (fewer grid steps, ~MB-sized DMAs) while
    keeping the double-buffered bf16 A tiles comfortably inside scoped VMEM."""
    if M < 256:
        return _round_up(M, 8)
    tm = 4096
    while tm > 256 and (tm > M or tm * K * 2 > (4 << 20)):
        tm //= 2
    return tm


def fused_matmul(As, Ws, shift, act=None, post=None, out_dtype=jnp.bfloat16):
    """As: list of (P, M, K_i) patch matrices; Ws: list of (P, K_i, OC) weights
    (BN scale folded); shift: (OC,) or (1, OC) f32.
    Returns post(sum_i act(A_i) @ W_i + shift) of shape (P, M, OC)."""
    As = [a.astype(jnp.bfloat16) for a in As]
    Ws = [w.astype(jnp.bfloat16) for w in Ws]
    P, M, _ = As[0].shape
    OC = Ws[0].shape[-1]
    Ks = [a.shape[-1] for a in As]
    n_in = len(As)

    tm = _pick_tm(M, sum(Ks))
    Mp = _round_up(M, tm)
    if Mp != M:
        As = [jnp.pad(a, ((0, 0), (0, Mp - M), (0, 0))) for a in As]
    shift = jnp.reshape(shift, (1, OC)).astype(jnp.float32)

    out_bytes = P * Mp * OC * jnp.dtype(out_dtype).itemsize
    cost = pl.CostEstimate(
        flops=2 * P * Mp * OC * sum(Ks),
        transcendentals=(P * Mp * OC) if post == "tanh" else 0,
        bytes_accessed=int(sum(P * Mp * k * 2 for k in Ks)
                           + sum(P * k * OC * 2 for k in Ks)
                           + OC * 4 + out_bytes))

    in_specs = ([pl.BlockSpec((None, tm, k), lambda p, i: (p, i, 0)) for k in Ks]
                + [pl.BlockSpec((None, k, OC), lambda p, i: (p, 0, 0)) for k in Ks]
                + [pl.BlockSpec((1, OC), lambda p, i: (0, 0))])

    kernel = functools.partial(_fused_kernel, n_in=n_in, act=act, post=post)
    out = pl.pallas_call(
        kernel,
        out_shape=jax.ShapeDtypeStruct((P, Mp, OC), out_dtype),
        grid_spec=pltpu.PrefetchScalarGridSpec(
            num_scalar_prefetch=0,
            grid=(P, Mp // tm),
            in_specs=in_specs,
            out_specs=pl.BlockSpec((None, tm, OC), lambda p, i: (p, i, 0)),
        ),
        compiler_params=pltpu.CompilerParams(
            dimension_semantics=("parallel", "parallel")),
        cost_estimate=cost,
    )(*As, *Ws, shift)
    if Mp != M:
        out = out[:, :M, :]
    return out


# ----------------------------------------------------------------------------
# im2col glue (plain JAX; static slices only), NHWC layout
# ----------------------------------------------------------------------------
def _im2col_nhwc(xp, k, s, OH, OW):
    """xp: padded NHWC input -> (N*OH*OW, k*k*C); columns ordered (kh, kw, c)."""
    N, _, _, C = xp.shape
    cols = []
    for kh in range(k):
        for kw in range(k):
            cols.append(xp[:, kh:kh + s * (OH - 1) + 1:s,
                              kw:kw + s * (OW - 1) + 1:s, :])
    p = jnp.stack(cols, axis=3)                  # (N, OH, OW, k*k, C)
    return p.reshape(N * OH * OW, k * k * C)


def conv_down(x, wm, shift, act, out_dtype=jnp.bfloat16):
    """Conv2d(k=4,s=2,p=1,bias=False) + fused pre-act + BN affine.  x: NHWC."""
    N, H, Wd, C = x.shape
    OH, OW = H // 2, Wd // 2
    xp = jnp.pad(x, ((0, 0), (1, 1), (1, 1), (0, 0)))
    A = _im2col_nhwc(xp, 4, 2, OH, OW)                          # (M, 16C)
    y = fused_matmul([A[None]], [wm[None]], shift, act=act, out_dtype=out_dtype)
    return y[0].reshape(N, OH, OW, -1)


# Kernel-tap indices per output parity: output row i = 2m+pi reads padded input
# rows {m+pi, m+pi+1}; from i = 2h-1+kh, the tap for offset dh is kh = 3-pi-2dh.
_KIDX = ((3, 1), (2, 0))


def _tconv_patches(x):
    """x: NHWC -> (4, N*H*W, 4*C) parity patch matrices, parity (pi, pj)
    row-major; columns ordered (dh, dw, c)."""
    N, H, Wd, C = x.shape
    M = N * H * Wd
    xp = jnp.pad(x, ((0, 0), (1, 1), (1, 1), (0, 0)))
    pats = []
    for pi in range(2):
        for pj in range(2):
            cols = [xp[:, pi + dh:pi + dh + H, pj + dw:pj + dw + Wd, :]
                    for dh in range(2) for dw in range(2)]
            pats.append(jnp.stack(cols, axis=3).reshape(M, 4 * C))
    return jnp.stack(pats, axis=0)                              # (4, M, 4C)


def _tconv_col2im(y, N, H, Wd, OC):
    """(4, N*H*W, OC) parity-major result -> (N, 2H, 2W, OC) interleaved."""
    y = y.reshape(2, 2, N, H, Wd, OC)                           # (pi,pj,N,H,W,OC)
    y = y.transpose(2, 3, 0, 4, 1, 5)                           # (N,H,pi,W,pj,OC)
    return y.reshape(N, 2 * H, 2 * Wd, OC)


def tconv_up(x, wm4, shift, act, post=None, out_dtype=None):
    """ConvTranspose2d(k=4,s=2,p=1,bias=False) as 4 output-parity stride-1
    convs with 2x2 sub-kernels, batched into one Pallas call.  x: NHWC."""
    if out_dtype is None:
        out_dtype = jnp.float32 if post == "tanh" else jnp.bfloat16
    N, H, Wd, _ = x.shape
    OC = wm4.shape[-1]
    A = _tconv_patches(x)
    y = fused_matmul([A], [wm4], shift, act=act, post=post, out_dtype=out_dtype)
    return _tconv_col2im(y, N, H, Wd, OC)


def tconv_up_cat(d, skip, wm_d, wm_s, shift, act, post=None, out_dtype=None):
    """ConvTranspose2d over torch.cat([d, skip], channel) WITHOUT materializing
    the concatenation: two patch matrices, two weight halves, summed in-kernel."""
    if out_dtype is None:
        out_dtype = jnp.float32 if post == "tanh" else jnp.bfloat16
    N, H, Wd, _ = d.shape
    OC = wm_d.shape[-1]
    A_d = _tconv_patches(d)
    A_s = _tconv_patches(skip)
    y = fused_matmul([A_d, A_s], [wm_d, wm_s], shift, act=act, post=post,
                     out_dtype=out_dtype)
    return _tconv_col2im(y, N, H, Wd, OC)


# ----------------------------------------------------------------------------
# Weight preparation (BN scale folding, layout for the kernel)
# ----------------------------------------------------------------------------
def prep_conv_weight(w, scale):
    """torch Conv2d weight (OC, C, 4, 4) -> (16*C, OC) bf16, BN scale folded."""
    OC = w.shape[0]
    wf = w * scale.reshape(OC, 1, 1, 1)
    return wf.transpose(2, 3, 1, 0).reshape(-1, OC).astype(jnp.bfloat16)


def prep_tconv_weight(w, scale):
    """torch ConvTranspose2d weight (IC, OC, 4, 4) -> (4, 4*IC, OC) bf16
    parity sub-kernels ordered (pi, pj) row-major, BN scale folded."""
    IC, OC = w.shape[0], w.shape[1]
    wf = w * scale.reshape(1, OC, 1, 1)
    mats = []
    for pi in range(2):
        for pj in range(2):
            sub = wf[:, :, jnp.array(_KIDX[pi]), :]
            sub = sub[:, :, :, jnp.array(_KIDX[pj])]            # (IC, OC, 2, 2)
            mats.append(sub.transpose(2, 3, 0, 1).reshape(4 * IC, OC))
    return jnp.stack(mats, axis=0).astype(jnp.bfloat16)


# ----------------------------------------------------------------------------
# Parameters (deterministic synthetic init; BN in eval mode -> affine)
# ----------------------------------------------------------------------------
def _bn_affine(key, c, eps=1e-5):
    k1, k2, k3, k4 = jax.random.split(key, 4)
    gamma = 1.0 + 0.1 * jax.random.normal(k1, (c,), jnp.float32)
    beta = 0.1 * jax.random.normal(k2, (c,), jnp.float32)
    r_mean = 0.1 * jax.random.normal(k3, (c,), jnp.float32)
    r_var = 1.0 + 0.5 * jax.random.uniform(k4, (c,), jnp.float32)
    scale = gamma / jnp.sqrt(r_var + eps)
    shift = beta - r_mean * scale
    return scale, shift


def _identity_affine(c):
    return jnp.ones((c,), jnp.float32), jnp.zeros((c,), jnp.float32)


def init_params(key, input_nc, output_nc, nf):
    enc_cfg = [  # (in_c, out_c, act, bn)
        (input_nc, nf,      None,    False),   # layer1
        (nf,       nf * 2,  "leaky", True),    # layer2
        (nf * 2,   nf * 4,  "leaky", True),    # layer3
        (nf * 4,   nf * 8,  "leaky", True),    # layer4
        (nf * 8,   nf * 8,  "leaky", True),    # layer5
        (nf * 8,   nf * 8,  "leaky", True),    # layer6
        (nf * 8,   nf * 8,  "leaky", True),    # layer7
        (nf * 8,   nf * 8,  "leaky", False),   # layer8
    ]
    dec_cfg = [  # (d_c, skip_c, out_c, act, bn, post)
        (nf * 8, 0,      nf * 8,    "relu", True,  None),    # dlayer8
        (nf * 8, nf * 8, nf * 8,    "relu", True,  None),    # dlayer7
        (nf * 8, nf * 8, nf * 8,    "relu", True,  None),    # dlayer6
        (nf * 8, nf * 8, nf * 8,    "relu", True,  None),    # dlayer5
        (nf * 8, nf * 8, nf * 4,    "relu", True,  None),    # dlayer4
        (nf * 4, nf * 4, nf * 2,    "relu", True,  None),    # dlayer3
        (nf * 2, nf * 2, nf,        "relu", True,  None),    # dlayer2
        (nf,     nf,     output_nc, "relu", False, "tanh"),  # dlayer1
    ]
    keys = jax.random.split(key, 2 * (len(enc_cfg) + len(dec_cfg)))
    ki = iter(keys)

    enc, dec = [], []
    for (ic, oc, act, bn) in enc_cfg:
        w = 0.05 * jax.random.normal(next(ki), (oc, ic, 4, 4), jnp.float32)
        scale, shift = _bn_affine(next(ki), oc) if bn else _identity_affine(oc)
        enc.append(dict(wm=prep_conv_weight(w, scale),
                        shift=shift.reshape(1, oc), act=act))
    for (dc, sc, oc, act, bn, post) in dec_cfg:
        w = 0.05 * jax.random.normal(next(ki), (dc + sc, oc, 4, 4), jnp.float32)
        scale, shift = _bn_affine(next(ki), oc) if bn else _identity_affine(oc)
        entry = dict(shift=shift.reshape(1, oc), act=act, post=post)
        if sc == 0:
            entry["wm"] = prep_tconv_weight(w, scale)
        else:
            entry["wm_d"] = prep_tconv_weight(w[:dc], scale)   # decoder half
            entry["wm_s"] = prep_tconv_weight(w[dc:], scale)   # skip half
        dec.append(entry)
    return enc, dec


# ----------------------------------------------------------------------------
# Forward pass of G (NCHW in, NCHW out; bf16 NHWC internally)
# ----------------------------------------------------------------------------
def g_forward(x, enc, dec):
    h = jnp.transpose(x, (0, 2, 3, 1)).astype(jnp.bfloat16)   # NCHW -> NHWC
    skips = []
    for p in enc:                                             # layer1 .. layer8
        h = conv_down(h, p["wm"], p["shift"], p["act"])
        skips.append(h)

    d = tconv_up(skips[-1], dec[0]["wm"], dec[0]["shift"],
                 dec[0]["act"], dec[0]["post"])               # dlayer8
    for p, skip in zip(dec[1:], reversed(skips[:-1])):        # dlayer7 .. dlayer1
        d = tconv_up_cat(d, skip, p["wm_d"], p["wm_s"], p["shift"],
                         p["act"], p["post"])
    return jnp.transpose(d, (0, 3, 1, 2))                     # NHWC -> NCHW (f32)


# ----------------------------------------------------------------------------
# Plain-JAX references for sanity checks
# ----------------------------------------------------------------------------
def _conv_ref(x, w):   # x: NHWC f32, w: (OC, C, 4, 4)
    k = w.transpose(2, 3, 1, 0)                               # HWIO
    return lax.conv_general_dilated(
        x, k, window_strides=(2, 2), padding=((1, 1), (1, 1)),
        dimension_numbers=("NHWC", "HWIO", "NHWC"),
        precision=lax.Precision.HIGHEST)


def _tconv_ref(x, w):  # x: NHWC f32, w: (IC, OC, 4, 4)
    k = w[:, :, ::-1, ::-1].transpose(2, 3, 0, 1)             # (kh, kw, IC, OC)
    return lax.conv_general_dilated(
        x, k, window_strides=(1, 1), padding=((2, 2), (2, 2)),
        lhs_dilation=(2, 2), dimension_numbers=("NHWC", "HWIO", "NHWC"),
        precision=lax.Precision.HIGHEST)


if __name__ == "__main__":
    key = jax.random.PRNGKey(0)
    (k_x, k_p, k_a, k_w, k_b, k_c1, k_c2, k_t1, k_t2,
     k_d1, k_d2, k_d3) = jax.random.split(key, 12)

    # --- sanity 1: fused act+matmul+shift+tanh kernel vs plain JAX -----------
    A0 = jax.random.normal(k_a, (2, 100, 48), jnp.float32).astype(jnp.bfloat16)
    W0 = (0.1 * jax.random.normal(k_w, (2, 48, 8), jnp.float32)).astype(jnp.bfloat16)
    sh0 = 0.1 * jax.random.normal(k_b, (8,), jnp.float32)
    got = fused_matmul([A0], [W0], sh0, act="leaky", post="tanh",
                       out_dtype=jnp.float32)
    a32 = A0.astype(jnp.float32)
    a32 = jnp.where(a32 > 0, a32, 0.2 * a32).astype(jnp.bfloat16).astype(jnp.float32)
    ref = jnp.tanh(jnp.einsum("pmk,pkn->pmn", a32, W0.astype(jnp.float32),
                              precision=lax.Precision.HIGHEST) + sh0)
    assert jnp.allclose(got, ref, atol=2e-2, rtol=2e-2), "fused_matmul mismatch"

    # --- sanity 2: strided conv (encoder path) vs lax reference --------------
    xc = jax.random.normal(k_c1, (1, 16, 16, 6), jnp.float32)
    wc = 0.1 * jax.random.normal(k_c2, (8, 6, 4, 4), jnp.float32)
    got = conv_down(xc.astype(jnp.bfloat16),
                    prep_conv_weight(wc, jnp.ones((8,), jnp.float32)),
                    jnp.zeros((1, 8), jnp.float32), act=None,
                    out_dtype=jnp.float32)
    ref = _conv_ref(xc.astype(jnp.bfloat16).astype(jnp.float32),
                    wc.astype(jnp.bfloat16).astype(jnp.float32))
    assert jnp.allclose(got, ref, atol=1e-2, rtol=1e-2), "conv_down mismatch"

    # --- sanity 3: transposed-conv parity decomposition vs lax reference -----
    xt = jax.random.normal(k_t1, (1, 8, 8, 6), jnp.float32)
    wt = 0.1 * jax.random.normal(k_t2, (6, 8, 4, 4), jnp.float32)
    got = tconv_up(xt.astype(jnp.bfloat16),
                   prep_tconv_weight(wt, jnp.ones((8,), jnp.float32)),
                   jnp.zeros((1, 8), jnp.float32), act=None,
                   out_dtype=jnp.float32)
    ref = _tconv_ref(xt.astype(jnp.bfloat16).astype(jnp.float32),
                     wt.astype(jnp.bfloat16).astype(jnp.float32))
    assert jnp.allclose(got, ref, atol=1e-2, rtol=1e-2), "tconv_up mismatch"

    # --- sanity 4: concat-free dual-input decoder path vs explicit concat ----
    d0 = jax.random.normal(k_d1, (1, 8, 8, 6), jnp.float32)
    s0 = jax.random.normal(k_d2, (1, 8, 8, 10), jnp.float32)
    wcat = 0.1 * jax.random.normal(k_d3, (16, 8, 4, 4), jnp.float32)
    ones8 = jnp.ones((8,), jnp.float32)
    zsh = jnp.zeros((1, 8), jnp.float32)
    got = tconv_up_cat(d0.astype(jnp.bfloat16), s0.astype(jnp.bfloat16),
                       prep_tconv_weight(wcat[:6], ones8),
                       prep_tconv_weight(wcat[6:], ones8),
                       zsh, act="relu", out_dtype=jnp.float32)
    ref = tconv_up(jnp.concatenate([d0, s0], axis=3).astype(jnp.bfloat16),
                   prep_tconv_weight(wcat, ones8), zsh, act="relu",
                   out_dtype=jnp.float32)
    assert jnp.allclose(got, ref, atol=1e-2, rtol=1e-2), "tconv_up_cat mismatch"

    # --- full G: 8 stride-2 downsamplings require a 256x256 input ------------
    input_nc, output_nc, nf = 3, 3, 4
    x = jax.random.normal(k_x, (1, input_nc, 256, 256), jnp.float32)
    enc, dec = init_params(k_p, input_nc, output_nc, nf)

    fwd = jax.jit(lambda xx: g_forward(xx, enc, dec))
    y = fwd(x)
    jax.block_until_ready(y)
    assert y.shape == (1, output_nc, 256, 256)
    assert bool(jnp.all(jnp.isfinite(y)))
    print("KERNEL_OK")
</pallas_src>

<mosaic_0001>
module attributes {stable_mosaic.version = 11 : i64} {
  func.func @_fused_kernel(%arg0: i32, %arg1: i32, %arg2: memref<1x104x48xbf16, #tpu.memory_space<vmem>>, %arg3: memref<1x48x8xbf16, #tpu.memory_space<vmem>>, %arg4: memref<1x8xf32, #tpu.memory_space<vmem>>, %arg5: memref<1x104x8xf32, #tpu.memory_space<vmem>>) attributes {dimension_semantics = [#tpu.dimension_semantics<parallel>, #tpu.dimension_semantics<parallel>], iteration_bounds = array<i64: 2, 1>, scalar_prefetch = 0 : i64, scratch_operands = 0 : i64, tpu.core_type = #tpu.core_type<tc>, window_params = [{transform_indices = @transform_0, window_bounds = array<i64: 1, 104, 48>}, {transform_indices = @transform_1, window_bounds = array<i64: 1, 48, 8>}, {pipeline_mode = #tpu.pipeline_mode<synchronous>, transform_indices = @transform_2, window_bounds = array<i64: 1, 8>}, {transform_indices = @transform_3, window_bounds = array<i64: 1, 104, 8>}]} {
    %c0 = arith.constant 0 : index
    %c0_0 = arith.constant 0 : index
    %c0_1 = arith.constant 0 : index
    %0 = vector.load %arg2[%c0, %c0_0, %c0_1] : memref<1x104x48xbf16, #tpu.memory_space<vmem>>, vector<1x104x48xbf16>
    %1 = vector.shape_cast %0 : vector<1x104x48xbf16> to vector<104x48xbf16>
    %2 = arith.extf %1 : vector<104x48xbf16> to vector<104x48xf32>
    %cst = arith.constant 0.000000e+00 : f32
    %3 = vector.broadcast %cst : f32 to vector<104x48xf32>
    %4 = arith.cmpf ogt, %2, %3 : vector<104x48xf32>
    %cst_2 = arith.constant 2.000000e-01 : f32
    %5 = vector.broadcast %cst_2 : f32 to vector<104x48xf32>
    %6 = arith.mulf %5, %2 : vector<104x48xf32>
    %7 = arith.select %4, %2, %6 : vector<104x48xi1>, vector<104x48xf32>
    %8 = arith.truncf %7 : vector<104x48xf32> to vector<104x48xbf16>
    %c0_3 = arith.constant 0 : index
    %c0_4 = arith.constant 0 : index
    %c0_5 = arith.constant 0 : index
    %9 = vector.load %arg3[%c0_3, %c0_4, %c0_5] : memref<1x48x8xbf16, #tpu.memory_space<vmem>>, vector<1x48x8xbf16>
    %10 = vector.shape_cast %9 : vector<1x48x8xbf16> to vector<48x8xbf16>
    %cst_6 = arith.constant dense<0.000000e+00> : vector<104x8xf32>
    %11 = tpu.matmul %8, %10, %cst_6 {dimension_numbers = #tpu.dot_dimension_numbers<[1], [0], [0], [1], [0, 0, 1, 1], [], []>} : vector<104x48xbf16>, vector<48x8xbf16>, vector<104x8xf32> -> vector<104x8xf32>
    %c0_7 = arith.constant 0 : index
    %c0_8 = arith.constant 0 : index
    %12 = vector.load %arg4[%c0_7, %c0_8] : memref<1x8xf32, #tpu.memory_space<vmem>>, vector<1x8xf32>
    %13 = vector.broadcast %12 : vector<1x8xf32> to vector<104x8xf32>
    %14 = arith.addf %11, %13 : vector<104x8xf32>
    %15 = math.tanh %14 : vector<104x8xf32>
    %c0_9 = arith.constant 0 : index
    %c0_10 = arith.constant 0 : index
    %c0_11 = arith.constant 0 : index
    %16 = vector.load %arg5[%c0_9, %c0_10, %c0_11] : memref<1x104x8xf32, #tpu.memory_space<vmem>>, vector<1x104x8xf32>
    %17 = vector.shape_cast %16 : vector<1x104x8xf32> to vector<104x8xf32>
    %18 = vector.shape_cast %15 : vector<104x8xf32> to vector<1x104x8xf32>
    tpu.vector_store %arg5[%c0_9, %c0_10, %c0_11], %18 {strides = array<i32>} : memref<1x104x8xf32, #tpu.memory_space<vmem>>, vector<1x104x8xf32>,
    return
  }
  func.func @transform_0(%arg0: i32, %arg1: i32) -> (i32, i32, i32) {
    %c0_i32 = arith.constant 0 : i32
    %c0_i32_0 = arith.constant 0 : i32
    return %arg0, %arg1, %c0_i32 : i32, i32, i32
  }
  func.func @transform_1(%arg0: i32, %arg1: i32) -> (i32, i32, i32) {
    %c0_i32 = arith.constant 0 : i32
    %c0_i32_0 = arith.constant 0 : i32
    %c0_i32_1 = arith.constant 0 : i32
    return %arg0, %c0_i32, %c0_i32_0 : i32, i32, i32
  }
  func.func @transform_2(%arg0: i32, %arg1: i32) -> (i32, i32) {
    %c0_i32 = arith.constant 0 : i32
    %c0_i32_0 = arith.constant 0 : i32
    %c0_i32_1 = arith.constant 0 : i32
    return %c0_i32, %c0_i32_0 : i32, i32
  }
  func.func @transform_3(%arg0: i32, %arg1: i32) -> (i32, i32, i32) {
    %c0_i32 = arith.constant 0 : i32
    %c0_i32_0 = arith.constant 0 : i32
    return %arg0, %arg1, %c0_i32 : i32, i32, i32
  }
}

</mosaic_0001>

<llo_original>
// kernel: tpu_custom_call.1
$region0: #{tpu_custom_call.1}
  #allocation0 [shape = 'u32[]', space=smem, size = 0x4, offset = 0x4, fixed_abs, tag = 'smem constant byte address 0x4 - core index']
  #allocation1 [shape = 'u32[144,128]{1,0:T(1,128)}', space=vmem, size = 0x12000, scoped, tag = 'internal scratch']
  %s0 = inlined_call_operand.vmem [shape: bf16[2,104,48], index: 0, kind: input, shape index: {}]
  %s1 = inlined_call_operand.vmem [shape: bf16[2,48,8], index: 1, kind: input, shape index: {}]
  %s2 = inlined_call_operand.vmem [shape: f32[1,8], index: 2, kind: input, shape index: {}]
  %s3 = inlined_call_operand.vmem [shape: f32[2,104,8], index: 3, kind: output, shape index: {}]
  %s4 = sld [smem:[#allocation0]]
  $region45: #{tpu_custom_call.1} parent=0
    _
  %s6 = ssub.s32 1, %s4
  %s7 = scalar_select 0, %s6, %s4
  loop: start=0, step=1, limit=4
  $region2: #{tpu_custom_call.1} parent=0 // loop_pre_header
    _
  $region3: #{tpu_custom_call.1} parent=0 // loop_header
    %s9 = sphi 0, %s13
    %p10 = scmp.ge.s32.totalorder %s9, 4
    %s16 = sphi 0, %s28
    %s17 = sphi 0, %s24
    %s18 = sphi 0, %s16
    %s19 = sphi 0, %s17
    %s20 = sphi 0, %s18
    %s21 = sphi 0, %s19
    %s33 = sphi 0, %s35
    %s36 = sphi 0, %s33
    %s37 = sphi 0, %s36
    %s53 = sphi 0, %s37
    %s59 = sphi 0, %s61
    %s62 = sphi 0, %s59
    %s63 = sphi 0, %s62
    %s79 = sphi 0, %s63
    %s83 = sphi 0, %s83
    %s85 = sphi 0, %s83
    %s86 = sphi 0, %s85
    %s100 = sphi 0, %s86
    %s108 = sphi 0, %s110
    %s111 = sphi 0, %s108
    %s112 = sphi 0, %s111
    %s128 = sphi 0, %s112
  $region4: #{tpu_custom_call.1} parent=0 // loop_header_branch
    %12 = sbr.rel (%p10) target = $region8
  $region5: #{tpu_custom_call.1} parent=0 // loop_body
    %s14 = ssub.s32 %s9, 1
    %s15 = ssub.s32 %s9, 2
    %s22 = sadd.s32 1, %s17
    %p23 = scmp.ge.s32.totalorder %s22, 1
    %s24 = scalar_select %p23, 0, %s22
    %s25 = sadd.s32 1, %s16
    %s26 = scalar_select %p23, %s25, %s16
    %p27 = scmp.ge.s32.totalorder %s26, 2
    %s28 = scalar_select %p27, 0, %s26
    %s29 = ssub.s32 %s16, %s28
    %s30 = ssub.s32 %s17, %s24
    %s31 = sor.u32 %s29, %s30
    %p32 = scmp.eq.s32.totalorder %s31, 0
    %s34 = sadd.s32 %s33, 1
    %s35 = scalar_select %p32, %s33, %s34
    %p38 = pneg %p32
    %p39 = scmp.eq.s32.totalorder %s9, 1
    %p40 = por %p38, %p39
    %p41 = scmp.ne.s32.totalorder %s33, %s36
    %p42 = scmp.eq.s32.totalorder %s9, 0
    %p43 = por %p41, %p42
    %p44 = scmp.ne.s32.totalorder %s33, %s36
    %p45 = scmp.eq.s32.totalorder %s14, 1
    %p46 = por %p44, %p45
    %p47 = scmp.ne.s32.totalorder %s36, %s37
    %p48 = scmp.eq.s32.totalorder %s14, 0
    %p49 = por %p47, %p48
    %p50 = scmp.ne.s32.totalorder %s36, %s37
    %p51 = scmp.eq.s32.totalorder %s15, 1
    %p52 = por %p50, %p51
    %p54 = scmp.ne.s32.totalorder %s37, %s53
    %p55 = scmp.eq.s32.totalorder %s15, 0
    %p56 = por %p54, %p55
    %s57 = ssub.s32 %s16, %s28
    %p58 = scmp.eq.s32.totalorder %s57, 0
    %s60 = sadd.s32 %s59, 1
    %s61 = scalar_select %p58, %s59, %s60
    %p64 = pneg %p58
    %p65 = scmp.eq.s32.totalorder %s9, 1
    %p66 = por %p64, %p65
    %p67 = scmp.ne.s32.totalorder %s59, %s62
    %p68 = scmp.eq.s32.totalorder %s9, 0
    %p69 = por %p67, %p68
    %p70 = scmp.ne.s32.totalorder %s59, %s62
    %p71 = scmp.eq.s32.totalorder %s14, 1
    %p72 = por %p70, %p71
    %p73 = scmp.ne.s32.totalorder %s62, %s63
    %p74 = scmp.eq.s32.totalorder %s14, 0
    %p75 = por %p73, %p74
    %p76 = scmp.ne.s32.totalorder %s62, %s63
    %p77 = scmp.eq.s32.totalorder %s15, 1
    %p78 = por %p76, %p77
    %p80 = scmp.ne.s32.totalorder %s63, %s79
    %p81 = scmp.eq.s32.totalorder %s15, 0
    %p82 = por %p80, %p81
    %s84 = sadd.s32 %s83, 1
    %p87 = scmp.eq.s32.totalorder %s9, 1
    %p88 = scmp.ne.s32.totalorder %s83, %s85
    %p89 = scmp.eq.s32.totalorder %s9, 0
    %p90 = por %p88, %p89
    %p91 = scmp.ne.s32.totalorder %s83, %s85
    %p92 = scmp.eq.s32.totalorder %s14, 1
    %p93 = por %p91, %p92
    %p94 = scmp.ne.s32.totalorder %s85, %s86
    %p95 = scmp.eq.s32.totalorder %s14, 0
    %p96 = por %p94, %p95
    %p97 = scmp.ne.s32.totalorder %s85, %s86
    %p98 = scmp.eq.s32.totalorder %s15, 1
    %p99 = por %p97, %p98
    %p101 = scmp.ne.s32.totalorder %s86, %s100
    %p102 = scmp.eq.s32.totalorder %s15, 0
    %p103 = por %p101, %p102
    %s104 = ssub.s32 %s16, %s28
    %s105 = ssub.s32 %s17, %s24
    %s106 = sor.u32 %s104, %s105
    %p107 = scmp.eq.s32.totalorder %s106, 0
    %s109 = sadd.s32 %s108, 1
    %s110 = scalar_select %p107, %s108, %s109
    %p113 = pneg %p107
    %p114 = scmp.eq.s32.totalorder %s9, 1
    %p115 = por %p113, %p114
    %p116 = scmp.ne.s32.totalorder %s108, %s111
    %p117 = scmp.eq.s32.totalorder %s9, 0
    %p118 = por %p116, %p117
    %p119 = scmp.ne.s32.totalorder %s108, %s111
    %p120 = scmp.eq.s32.totalorder %s14, 1
    %p121 = por %p119, %p120
    %p122 = scmp.ne.s32.totalorder %s111, %s112
    %p123 = scmp.eq.s32.totalorder %s14, 0
    %p124 = por %p122, %p123
    %p125 = scmp.ne.s32.totalorder %s111, %s112
    %p126 = scmp.eq.s32.totalorder %s15, 1
    %p127 = por %p125, %p126
    %p129 = scmp.ne.s32.totalorder %s112, %s128
    %p130 = scmp.eq.s32.totalorder %s15, 0
    %p131 = por %p129, %p130
    %p132 = scmp.le.s32.totalorder 1, %s9
    %p133 = scmp.lt.s32.totalorder %s9, 3
    %p134 = pnand %p132, %p133
    %p135 = pneg %p134
    // Predicated region
    $region9: #{tpu_custom_call.1} parent=5 // pred_check
      _
    $region10: #{tpu_custom_call.1} parent=5 // pred_check_branch
      %137 = sbr.rel (%p134) target = $region12
    $region11: #{tpu_custom_call.1} parent=5 // pred_region
      %s138 = ssub.s32 %s9, 1
      // Predicated region
      $region13: #{tpu_custom_call.1} parent=11 // pred_check
        %p139 = pneg %p96
      $region14: #{tpu_custom_call.1} parent=11 // pred_check_branch
        %141 = sbr.rel (%p139) target = $region16
      $region15: #{tpu_custom_call.1} parent=11 // pred_region
        _
      $region16: #{tpu_custom_call.1} parent=11 // pred_fallthru
        _
    $region12: #{tpu_custom_call.1} parent=5 // pred_fallthru
      _
    %p142 = scmp.lt.s32.totalorder %s9, 2
    // Predicated region
    $region17: #{tpu_custom_call.1} parent=5 // pred_check
      %p143 = pneg %p142
    $region18: #{tpu_custom_call.1} parent=5 // pred_check_branch
      %145 = sbr.rel (%p143) target = $region20
    $region19: #{tpu_custom_call.1} parent=5 // pred_region
      // Predicated region
      $region21: #{tpu_custom_call.1} parent=19 // pred_check
        %p146 = pneg %p43
      $region22: #{tpu_custom_call.1} parent=19 // pred_check_branch
        %148 = sbr.rel (%p146) target = $region24
      $region23: #{tpu_custom_call.1} parent=19 // pred_region
        %s149 = smul.u32 13, %s17
        %p150 = scmp.lt.s32.totalorder %s16, 1
        %s151 = scalar_select %p150, %s16, 1
        %p152 = scmp.lt.s32.totalorder %s149, 12
        %s153 = scalar_select %p152, %s149, 12
        %s154 = smul.addr %s151, 13
        %s155 = sadd.s32 %s153, %s154
        %s156 = smul.addr %s155, 4
        %s157 = scalar_lea.vmem %s0, %s156
        %s158 = smul.u32 13, %s17
      $region24: #{tpu_custom_call.1} parent=19 // pred_fallthru
        _
      // Predicated region
      $region25: #{tpu_custom_call.1} parent=19 // pred_check
        %p159 = pneg %p69
      $region26: #{tpu_custom_call.1} parent=19 // pred_check_branch
        %161 = sbr.rel (%p159) target = $region28
      $region27: #{tpu_custom_call.1} parent=19 // pred_region
        %p162 = scmp.lt.s32.totalorder %s16, 1
        %s163 = scalar_select %p162, %s16, 1
        %s164 = smul.addr %s163, 6
        %s165 = smul.addr %s164, 4
        %s166 = scalar_lea.vmem %s1, %s165
      $region28: #{tpu_custom_call.1} parent=19 // pred_fallthru
        _
    $region20: #{tpu_custom_call.1} parent=5 // pred_fallthru
      _
    %p167 = scmp.le.s32.totalorder 1, %s9
    %p168 = scmp.lt.s32.totalorder %s9, 3
    %p169 = pnand %p167, %p168
    %p170 = pneg %p169
    // Predicated region
    $region29: #{tpu_custom_call.1} parent=5 // pred_check
      _
    $region30: #{tpu_custom_call.1} parent=5 // pred_check_branch
      %172 = sbr.rel (%p169) target = $region32
    $region31: #{tpu_custom_call.1} parent=5 // pred_region
      %s173 = ssub.s32 %s9, 1
      %s174 = smul.u32 13, %s19
      %p175 = scmp.lt.s32.totalorder %s18, 1
      %s176 = scalar_select %p175, %s18, 1
      %p177 = scmp.lt.s32.totalorder %s174, 12
      %s178 = scalar_select %p177, %s174, 12
      %s179 = smul.addr %s176, 13
      %s180 = sadd.s32 %s178, %s179
      %s181 = smul.addr %s180, 4
      %s182 = scalar_lea.vmem %s0, %s181
      %p183 = pneg %p49
      %p184 = pneg %p46
      %p185 = scmp.lt.s32.totalorder %s18, 1
      %s186 = scalar_select %p185, %s18, 1
      %s187 = smul.addr %s186, 6
      %s188 = smul.addr %s187, 4
      %s189 = scalar_lea.vmem %s1, %s188
      %p190 = pneg %p75
      %p191 = pneg %p72
      %p192 = pneg %p96
      %p193 = pneg %p93
      %p194 = pneg %p124
      %p195 = pneg %p121
      %s196 = smul.u32 13, %s19
      %p197 = scmp.lt.s32.totalorder %s18, 1
      %s198 = scalar_select %p197, %s18, 1
      %p199 = scmp.lt.s32.totalorder %s196, 12
      %s200 = scalar_select %p199, %s196, 12
      %s201 = smul.addr %s198, 13
      %s202 = sadd.s32 %s200, %s201
      %s203 = smul.addr %s202, 8
      %s204 = scalar_lea.vmem %s3, %s203
      %s205 = smul.u32 13, %s19
      %p206 = scmp.lt.s32.totalorder %s18, 1
      %s207 = scalar_select %p206, %s18, 1
      %p208 = scmp.lt.s32.totalorder %s205, 12
      %s209 = scalar_select %p208, %s205, 12
      %s210 = smul.addr %s207, 13
      %s211 = sadd.s32 %s209, %s210
      %s212 = smul.addr %s211, 4
      %s213 = scalar_lea.vmem %s0, %s212
      %s214 = smul.u32 13, %s19
      %p215 = scmp.lt.s32.totalorder %s18, 1
      %s216 = scalar_select %p215, %s18, 1
      %s217 = smul.addr %s216, 6
      %s218 = smul.addr %s217, 4
      %s219 = scalar_lea.vmem %s1, %s218
      %s220 = smul.u32 13, %s19
      %p221 = scmp.lt.s32.totalorder %s18, 1
      %s222 = scalar_select %p221, %s18, 1
      %p223 = scmp.lt.s32.totalorder %s220, 12
      %s224 = scalar_select %p223, %s220, 12
      %s225 = smul.addr %s222, 13
      %s226 = sadd.s32 %s224, %s225
      %s227 = smul.addr %s226, 8
      %s228 = scalar_lea.vmem %s3, %s227
      %s229 = smul.u32 13, %s19
      %v231 = vld [vmem:[%s213] sm:$0xf]
      %v232 = vld [vmem:[%s213 + $0x4] sm:$0xf]
      %v233 = vld [vmem:[%s213 + $0x8] sm:$0xf]
      %v234 = vld [vmem:[%s213 + $0xc] sm:$0xf]
      %v235 = vld [vmem:[%s213 + $0x10] sm:$0xf]
      %v236 = vld [vmem:[%s213 + $0x14] sm:$0xf]
      %v237 = vld [vmem:[%s213 + $0x18] sm:$0xf]
      %v238 = vld [vmem:[%s213 + $0x1c] sm:$0xf]
      %v239 = vld [vmem:[%s213 + $0x20] sm:$0xf]
      %v240 = vld [vmem:[%s213 + $0x24] sm:$0xf]
      %v241 = vld [vmem:[%s213 + $0x28] sm:$0xf]
      %v242 = vld [vmem:[%s213 + $0x2c] sm:$0xf]
      %v243 = vld [vmem:[%s213 + $0x30] sm:$0xf]
      %v244 = vunpack.c.l.bf16 %v231
      %v245 = vunpack.c.l.bf16 %v232
      %v246 = vunpack.c.l.bf16 %v233
      %v247 = vunpack.c.l.bf16 %v234
      %v248 = vunpack.c.l.bf16 %v235
      %v249 = vunpack.c.l.bf16 %v236
      %v250 = vunpack.c.l.bf16 %v237
      %v251 = vunpack.c.l.bf16 %v238
      %v252 = vunpack.c.l.bf16 %v239
      %v253 = vunpack.c.l.bf16 %v240
      %v254 = vunpack.c.l.bf16 %v241
      %v255 = vunpack.c.l.bf16 %v242
      %v256 = vunpack.c.l.bf16 %v243
      %vm257 = vcmp.gt.f32.partialorder %v244, 0.0
      %vm258 = vcmp.gt.f32.partialorder %v245, 0.0
      %vm259 = vcmp.gt.f32.partialorder %v246, 0.0
      %vm260 = vcmp.gt.f32.partialorder %v247, 0.0
      %vm261 = vcmp.gt.f32.partialorder %v248, 0.0
      %vm262 = vcmp.gt.f32.partialorder %v249, 0.0
      %vm263 = vcmp.gt.f32.partialorder %v250, 0.0
      %vm264 = vcmp.gt.f32.partialorder %v251, 0.0
      %vm265 = vcmp.gt.f32.partialorder %v252, 0.0
      %vm266 = vcmp.gt.f32.partialorder %v253, 0.0
      %vm267 = vcmp.gt.f32.partialorder %v254, 0.0
      %vm268 = vcmp.gt.f32.partialorder %v255, 0.0
      %vm269 = vcmp.gt.f32.partialorder %v256, 0.0
      %v270 = vmul.f32 %v244, 0.2
      %v271 = vmul.f32 %v245, 0.2
      %v272 = vmul.f32 %v246, 0.2
      %v273 = vmul.f32 %v247, 0.2
      %v274 = vmul.f32 %v248, 0.2
      %v275 = vmul.f32 %v249, 0.2
      %v276 = vmul.f32 %v250, 0.2
      %v277 = vmul.f32 %v251, 0.2
      %v278 = vmul.f32 %v252, 0.2
      %v279 = vmul.f32 %v253, 0.2
      %v280 = vmul.f32 %v254, 0.2
      %v281 = vmul.f32 %v255, 0.2
      %v282 = vmul.f32 %v256, 0.2
      %v283 = vsel %vm257, %v244, %v270
      %v284 = vsel %vm258, %v245, %v271
      %v285 = vsel %vm259, %v246, %v272
      %v286 = vsel %vm260, %v247, %v273
      %v287 = vsel %vm261, %v248, %v274
      %v288 = vsel %vm262, %v249, %v275
      %v289 = vsel %vm263, %v250, %v276
      %v290 = vsel %vm264, %v251, %v277
      %v291 = vsel %vm265, %v252, %v278
      %v292 = vsel %vm266, %v253, %v279
      %v293 = vsel %vm267, %v254, %v280
      %v294 = vsel %vm268, %v255, %v281
      %v295 = vsel %vm269, %v256, %v282
      %v296 = vpack.c.bf16 %v284, %v283
      %v297 = vpack.c.bf16 %v286, %v285
      %v298 = vpack.c.bf16 %v288, %v287
      %v299 = vpack.c.bf16 %v290, %v289
      %v300 = vpack.c.bf16 %v292, %v291
      %v301 = vpack.c.bf16 %v294, %v293
      %v302 = vpack.c.bf16 %v295, %v295
      %v303 = vld [vmem:[%s219] sm:$0xf]
      %v304 = vld [vmem:[%s219 + $0x4] sm:$0xf]
      %v305 = vld [vmem:[%s219 + $0x8] sm:$0xf]
      %v306 = vld [vmem:[%s219 + $0xc] sm:$0xf]
      %v307 = vld [vmem:[%s219 + $0x10] sm:$0xf]
      %v308 = vld [vmem:[%s219 + $0x14] sm:$0xf]
      %v309 = vld [vmem:[%s2] sm:$0x1]
      %v311 = vlaneseq
      %v312 = vshrl.u32 %v311, 7
      %v313 = vsub.s32 0, %v312
      %v314 = vrot.slane %v309, %v313
      %v322 = vunpack.c.l.b16 %v303
      %v323 = vunpack.c.l.b16 %v304
      %v324 = vunpack.c.l.b16 %v305
      %v325 = vunpack.c.l.b16 %v306
      %v326 = vunpack.c.l.b16 %v307
      %v327 = vunpack.c.l.b16 %v308
      %v328 = vpack.c.b16 %v323, %v322
      %v329 = vpack.c.b16 %v325, %v324
      %v330 = vpack.c.b16 %v327, %v326
      %vm334 = vcmask 392192
      %v336 = vsel %vm334, %v296, 0
      %v339 = vsel %vm334, %v297, 0
      %v342 = vsel %vm334, %v298, 0
      %v345 = vsel %vm334, %v299, 0
      %v348 = vsel %vm334, %v300, 0
      %v351 = vsel %vm334, %v301, 0
      %v354 = vsel %vm334, %v302, 0
      %356 = vmatprep.subr.bf16.mxu0 0
      %357 = vmatpush1.bf16.msra.mxu0 %v328
      %358 = vmatprep.subr.bf16.mxu0 0
      %359 = vmatpush1.bf16.msra.mxu0 %v329
      %360 = vmatprep.subr.bf16.mxu0 0
      %361 = vmatpush1.bf16.msra.mxu0 %v330
      %362 = vmatprep.subr.bf16.mxu0 0
      %363 = vmatpush1.bf16.msra.mxu0 0
      %364 = vmatprep.subr.bf16.mxu0 0
      %365 = vmatpush1.bf16.msra.mxu0 0
      %366 = vmatprep.subr.bf16.mxu0 0
      %367 = vmatpush1.bf16.msra.mxu0 0
      %368 = vmatprep.subr.bf16.mxu0 0
      %369 = vmatpush1.bf16.msra.mxu0 0
      %370 = vmatprep.subr.bf16.mxu0 0
      %371 = vmatpush1.bf16.msra.mxu0 0
      %372 = vmatprep.subr.bf16.mxu0 0
      %373 = vmatpush1.bf16.msra.mxu0 0
      %374 = vmatprep.subr.bf16.mxu0 0
      %375 = vmatpush1.bf16.msra.mxu0 0
      %376 = vmatprep.subr.bf16.mxu0 0
      %377 = vmatpush1.bf16.msra.mxu0 0
      %378 = vmatprep.subr.bf16.mxu0 0
      %379 = vmatpush1.bf16.msra.mxu0 0
      %380 = vmatprep.subr.bf16.mxu0 0
      %381 = vmatpush1.bf16.msra.mxu0 0
      %382 = vmatprep.subr.bf16.mxu0 0
      %383 = vmatpush1.bf16.msra.mxu0 0
      %384 = vmatprep.subr.bf16.mxu0 0
      %385 = vmatpush1.bf16.msra.mxu0 0
      %386 = vmatprep.subr.bf16.mxu0 0
      %387 = vmatpush1.bf16.msra.mxu0 0
      %388 = vmatprep.mubr.bf16.mxu0 0
      %389 = vmatmul.mubr.bf16.gmra.mrb[0].mxu0 %v336
      %v390 = vpop.f32.mrb[0].mxu0
      %v391 = vadd.f32 %v314, %v390
      %v392 = vpop.f32.mrb[0].mxu0
      %v393 = vpop.f32.mrb[0].mxu0
      %v394 = vadd.f32 %v314, %v393
      %v395 = vpop.f32.mrb[0].mxu0
      %396 = vmatprep.mubr.bf16.mxu0 0
      %397 = vmatmul.mubr.bf16.gmra.mrb[0].mxu0 %v339
      %v398 = vpop.f32.mrb[0].mxu0
      %v399 = vadd.f32 %v314, %v398
      %v400 = vpop.f32.mrb[0].mxu0
      %v401 = vpop.f32.mrb[0].mxu0
      %v402 = vadd.f32 %v314, %v401
      %v403 = vpop.f32.mrb[0].mxu0
      %404 = vmatprep.mubr.bf16.mxu0 0
      %405 = vmatmul.mubr.bf16.gmra.mrb[0].mxu0 %v342
      %v406 = vpop.f32.mrb[0].mxu0
      %v407 = vadd.f32 %v314, %v406
      %v408 = vpop.f32.mrb[0].mxu0
      %v409 = vpop.f32.mrb[0].mxu0
      %v410 = vadd.f32 %v314, %v409
      %v411 = vpop.f32.mrb[0].mxu0
      %412 = vmatprep.mubr.bf16.mxu0 0
      %413 = vmatmul.mubr.bf16.gmra.mrb[0].mxu0 %v345
      %v414 = vpop.f32.mrb[0].mxu0
      %v415 = vadd.f32 %v314, %v414
      %v416 = vpop.f32.mrb[0].mxu0
      %v417 = vpop.f32.mrb[0].mxu0
      %v418 = vadd.f32 %v314, %v417
      %v419 = vpop.f32.mrb[0].mxu0
      %420 = vmatprep.mubr.bf16.mxu0 0
      %421 = vmatmul.mubr.bf16.gmra.mrb[0].mxu0 %v348
      %v422 = vpop.f32.mrb[0].mxu0
      %v423 = vadd.f32 %v314, %v422
      %v424 = vpop.f32.mrb[0].mxu0
      %v425 = vpop.f32.mrb[0].mxu0
      %v426 = vadd.f32 %v314, %v425
      %v427 = vpop.f32.mrb[0].mxu0
      %428 = vmatprep.mubr.bf16.mxu0 0
      %429 = vmatmul.mubr.bf16.gmra.mrb[0].mxu0 %v351
      %v430 = vpop.f32.mrb[0].mxu0
      %v431 = vadd.f32 %v314, %v430
      %v432 = vpop.f32.mrb[0].mxu0
      %v433 = vpop.f32.mrb[0].mxu0
      %v434 = vadd.f32 %v314, %v433
      %v435 = vpop.f32.mrb[0].mxu0
      %436 = vmatprep.mubr.bf16.mxu0 0
      %437 = vmatmul.mubr.bf16.gmra.mrb[0].mxu0 %v354
      %v438 = vpop.f32.mrb[0].mxu0
      %v439 = vadd.f32 %v314, %v438
      %v440 = vpop.f32.mrb[0].mxu0
      %v441 = vpop.f32.mrb[0].mxu0
      %v442 = vpop.f32.mrb[0].mxu0
      %443 = vdwg.mxu0
      %v444 = vtanh.pop %v391
      %v445 = vtanh.pop %v394
      %v446 = vtanh.pop %v399
      %v447 = vtanh.pop %v402
      %v448 = vtanh.pop %v407
      %v449 = vtanh.pop %v410
      %v450 = vtanh.pop %v415
      %v451 = vtanh.pop %v418
      %v452 = vtanh.pop %v423
      %v453 = vtanh.pop %v426
      %v454 = vtanh.pop %v431
      %v455 = vtanh.pop %v434
      %v456 = vtanh.pop %v439
      %vm457 = vcmask 64512
      %458 = vst.msk [vmem:[%s228] sm:$0xff] %vm457, %v444
      %459 = vst.msk [vmem:[%s228 + $0x8] sm:$0xff] %vm457, %v445
      %460 = vst.msk [vmem:[%s228 + $0x10] sm:$0xff] %vm457, %v446
      %461 = vst.msk [vmem:[%s228 + $0x18] sm:$0xff] %vm457, %v447
      %462 = vst.msk [vmem:[%s228 + $0x20] sm:$0xff] %vm457, %v448
      %463 = vst.msk [vmem:[%s228 + $0x28] sm:$0xff] %vm457, %v449
      %464 = vst.msk [vmem:[%s228 + $0x30] sm:$0xff] %vm457, %v450
      %465 = vst.msk [vmem:[%s228 + $0x38] sm:$0xff] %vm457, %v451
      %466 = vst.msk [vmem:[%s228 + $0x40] sm:$0xff] %vm457, %v452
      %467 = vst.msk [vmem:[%s228 + $0x48] sm:$0xff] %vm457, %v453
      %468 = vst.msk [vmem:[%s228 + $0x50] sm:$0xff] %vm457, %v454
      %469 = vst.msk [vmem:[%s228 + $0x58] sm:$0xff] %vm457, %v455
      %470 = vst.msk [vmem:[%s228 + $0x60] sm:$0xff] %vm457, %v456
      %s471 = smul.u32 13, %s19
      %p472 = scmp.lt.s32.totalorder %s18, 1
      %s473 = scalar_select %p472, %s18, 1
      %p474 = scmp.lt.s32.totalorder %s471, 12
      %s475 = scalar_select %p474, %s471, 12
      %s476 = smul.addr %s473, 13
      %s477 = sadd.s32 %s475, %s476
      %s478 = smul.addr %s477, 8
      %s479 = scalar_lea.vmem %s3, %s478
      // Predicated region
      $region33: #{tpu_custom_call.1} parent=31 // pred_check
        %p480 = pneg %p121
      $region34: #{tpu_custom_call.1} parent=31 // pred_check_branch
        %482 = sbr.rel (%p480) target = $region36
      $region35: #{tpu_custom_call.1} parent=31 // pred_region
        %s483 = smul.u32 13, %s19
      $region36: #{tpu_custom_call.1} parent=31 // pred_fallthru
        _
    $region32: #{tpu_custom_call.1} parent=5 // pred_fallthru
      _
    %p484 = scmp.le.s32.totalorder 2, %s9
    // Predicated region
    $region37: #{tpu_custom_call.1} parent=5 // pred_check
      %p485 = pneg %p484
    $region38: #{tpu_custom_call.1} parent=5 // pred_check_branch
      %487 = sbr.rel (%p485) target = $region40
    $region39: #{tpu_custom_call.1} parent=5 // pred_region
      %s488 = ssub.s32 %s9, 2
      // Predicated region
      $region41: #{tpu_custom_call.1} parent=39 // pred_check
        %p489 = pneg %p127
      $region42: #{tpu_custom_call.1} parent=39 // pred_check_branch
        %491 = sbr.rel (%p489) target = $region44
      $region43: #{tpu_custom_call.1} parent=39 // pred_region
        %s492 = smul.u32 13, %s21
        %p493 = scmp.lt.s32.totalorder %s20, 1
        %s494 = scalar_select %p493, %s20, 1
        %p495 = scmp.lt.s32.totalorder %s492, 12
        %s496 = scalar_select %p495, %s492, 12
        %s497 = smul.addr %s494, 13
        %s498 = sadd.s32 %s496, %s497
        %s499 = smul.addr %s498, 8
        %s500 = scalar_lea.vmem %s3, %s499
      $region44: #{tpu_custom_call.1} parent=39 // pred_fallthru
        _
    $region40: #{tpu_custom_call.1} parent=5 // pred_fallthru
      _
  $region6: #{tpu_custom_call.1} parent=0 // loop_footer
    %s13 = sadd.s32 1, %s9
  $region7: #{tpu_custom_call.1} parent=0 // loop_footer_branch
    %8 = sbr.rel target = $region3
  $region8: #{tpu_custom_call.1} parent=0 // loop_exit
    _

</llo_original>
